<compile_context>
chip_gen: v7x
topology: tpu7x:2x2x1
jax: 0.10.0
libtpu: 0.0.40
codegen_flags: <defaults>
</compile_context>

<pallas_src>
import functools

import jax
import jax.numpy as jnp
from jax.experimental import pallas as pl
from jax.experimental.pallas import tpu as pltpu


def _label_smoothing_kernel(target_ref, pred_ref, out_ref, *,
                            confidence, smooth_val, n_valid):
    """One batch tile.

    target_ref: (tile_n, 1) int32   (rows >= n_valid may be garbage -> masked)
    pred_ref:   (tile_n, C) float   (any float dtype; compute in f32)
    out_ref:    (1, 8, 128) f32     per-tile partial loss sum stored at [0,0,0]
    """
    pred = pred_ref[...].astype(jnp.float32)                      # (tile_n, C)
    tgt = target_ref[...]                                         # (tile_n, 1)
    tile_n, c = pred.shape

    # log-softmax pieces: 2 lane reductions (max, sum-exp).
    row_max = jnp.max(pred, axis=-1, keepdims=True)               # (tile_n, 1)
    lse = jnp.log(jnp.sum(jnp.exp(pred - row_max),
                          axis=-1, keepdims=True))                # (tile_n, 1)

    # loss_i = -sum_c td[i,c] * (pred[i,c] - row_max_i - lse_i)
    #        = (row_max_i + lse_i) - sum_c w[i,c] * pred[i,c]    (sum_c w == 1)
    # Iota stays (1, C); the == comparison broadcasts against (tile_n, 1).
    col = jax.lax.broadcasted_iota(jnp.int32, (1, c), 1)          # (1, C)
    w = jnp.where(col == tgt, confidence, smooth_val)             # (tile_n, C)
    weighted = jnp.sum(w * pred, axis=-1, keepdims=True)          # lane reduce 3

    per_row = (row_max + lse) - weighted                          # (tile_n, 1)

    # SELECT-mask (never multiply!) rows past the true batch size so NaN/Inf
    # from a partial last tile cannot propagate; reduce to one scalar per tile.
    row0 = pl.program_id(0) * tile_n
    rows = row0 + jax.lax.broadcasted_iota(jnp.int32, per_row.shape, 0)
    tile_sum = jnp.sum(jnp.where(rows < n_valid, per_row, 0.0))

    # Lane-aligned partial-sum block: value at [0, 0, 0], zeros elsewhere.
    sub = jax.lax.broadcasted_iota(jnp.int32, out_ref.shape, 1)
    lane = jax.lax.broadcasted_iota(jnp.int32, out_ref.shape, 2)
    out_ref[...] = jnp.where((sub == 0) & (lane == 0), tile_sum, 0.0)


def _vmem_budget_bytes():
    """Generation-aware scoped-VMEM budget (v7x only has 64 MiB per core)."""
    try:
        phys = pltpu.get_tpu_info().vmem_capacity_bytes
    except Exception:
        phys = 64 << 20                      # conservative (v7x-sized) default
    return min(phys // 2, 64 << 20)          # ~32 MiB on v7x, 64 MiB on v5e/v6e


def _working_set_bytes(rows, c, in_itemsize):
    # 2x double-buffered pred input + ~3 f32 (rows, C) temporaries
    # + 2x lane-padded (rows, 1) int32 target block + slack for output/misc.
    return rows * (c * (2 * in_itemsize + 3 * 4) + 2 * 128 * 4) + (1 << 20)


def _choose_tile_n(n, c, in_itemsize, budget):
    """Rows per tile sized by the f32 working set (no arbitrary row cap)."""
    per_row = c * (2 * in_itemsize + 3 * 4) + 2 * 128 * 4
    rows = max(1, (budget - (1 << 20)) // per_row)
    if rows >= n:
        return n                              # single tile covering full batch
    min_rows = 8 if in_itemsize >= 4 else 16  # f32 sublane tile 8, bf16 16
    return max(min_rows, (rows // 16) * 16)


def label_smoothing_loss(pred, target, classes, smoothing=0.1, tile_n=None):
    """pred: [N, C] float (f32 or bf16), target: [N] int. Scalar f32 mean loss."""
    n, c = pred.shape
    assert c == classes
    assert classes >= 2, "label smoothing needs at least 2 classes"
    confidence = 1.0 - smoothing
    smooth_val = smoothing / (classes - 1)

    itemsize = jnp.dtype(pred.dtype).itemsize
    budget = _vmem_budget_bytes()
    if tile_n is None:
        tile_n = _choose_tile_n(n, c, itemsize, budget)
    else:
        tile_n = int(tile_n)
        tile_n = n if tile_n >= n else max(16, (tile_n // 16) * 16)

    num_tiles = pl.cdiv(n, tile_n)
    target2d = target.astype(jnp.int32).reshape(n, 1)
    vmem_limit = int(max(budget, _working_set_bytes(tile_n, c, itemsize)))

    partial = pl.pallas_call(
        functools.partial(
            _label_smoothing_kernel,
            confidence=confidence,
            smooth_val=smooth_val,
            n_valid=n,
        ),
        out_shape=jax.ShapeDtypeStruct((num_tiles, 8, 128), jnp.float32),
        grid_spec=pltpu.PrefetchScalarGridSpec(
            num_scalar_prefetch=0,
            grid=(num_tiles,),
            in_specs=[
                # (tile_n, 1) int32 target block is lane-padded in VMEM; the
                # working-set model above accounts for it.
                pl.BlockSpec((tile_n, 1), lambda i: (i, 0)),   # target
                pl.BlockSpec((tile_n, c), lambda i: (i, 0)),   # pred (no pad)
            ],
            out_specs=pl.BlockSpec((1, 8, 128), lambda i: (i, 0, 0)),
        ),
        compiler_params=pltpu.CompilerParams(
            dimension_semantics=("parallel",),
            vmem_limit_bytes=vmem_limit,
        ),
    )(target2d, pred)

    # Only [i, 0, 0] is non-zero per tile; one global sum + normalize by true N.
    return jnp.sum(partial) / n


def _reference(pred, target, classes, smoothing=0.1):
    """Pure-JAX reference mirroring the PyTorch module exactly."""
    confidence = 1.0 - smoothing
    logp = jax.nn.log_softmax(pred.astype(jnp.float32), axis=-1)
    n, c = pred.shape
    true_dist = jnp.full((n, c), smoothing / (classes - 1), jnp.float32)
    true_dist = true_dist.at[jnp.arange(n), target].set(confidence)
    return jnp.mean(jnp.sum(-true_dist * logp, axis=-1))


if __name__ == "__main__":
    key = jax.random.PRNGKey(0)
    k1, k2, k3, k4 = jax.random.split(key, 4)

    # --- main check: small shapes, f32, single tile ---
    N, C = 8, 32
    pred = jax.random.normal(k1, (N, C), dtype=jnp.float32)
    target = jax.random.randint(k2, (N,), 0, C, dtype=jnp.int32)

    loss = jax.block_until_ready(
        label_smoothing_loss(pred, target, classes=C, smoothing=0.1))
    ref = _reference(pred, target, classes=C, smoothing=0.1)
    assert jnp.allclose(loss, ref, atol=1e-4, rtol=1e-5), (loss, ref)

    # --- multi-tile + ragged-N check (no wrapper pad; last tile masked) ---
    N2, C2 = 40, 32
    pred2 = jax.random.normal(k3, (N2, C2), dtype=jnp.float32)
    target2 = jax.random.randint(k4, (N2,), 0, C2, dtype=jnp.int32)
    loss2 = jax.block_until_ready(
        label_smoothing_loss(pred2, target2, classes=C2, smoothing=0.1, tile_n=16))
    ref2 = _reference(pred2, target2, classes=C2, smoothing=0.1)
    assert jnp.allclose(loss2, ref2, atol=1e-4, rtol=1e-5), (loss2, ref2)

    # --- bf16 input path (halves HBM traffic; compute stays f32 in-kernel) ---
    pred_bf16 = pred.astype(jnp.bfloat16)
    loss_bf16 = jax.block_until_ready(
        label_smoothing_loss(pred_bf16, target, classes=C, smoothing=0.1))
    ref_bf16 = _reference(pred_bf16, target, classes=C, smoothing=0.1)
    assert jnp.allclose(loss_bf16, ref_bf16, atol=1e-4, rtol=1e-4), (loss_bf16, ref_bf16)

    print("KERNEL_OK")
</pallas_src>

<mosaic_0001>
module attributes {stable_mosaic.version = 11 : i64} {
  func.func @_label_smoothing_kernel(%arg0: i32, %arg1: memref<8x1xi32, #tpu.memory_space<vmem>>, %arg2: memref<8x32xf32, #tpu.memory_space<vmem>>, %arg3: memref<1x8x128xf32, #tpu.memory_space<vmem>>) attributes {dimension_semantics = [#tpu.dimension_semantics<parallel>], iteration_bounds = array<i64: 1>, scalar_prefetch = 0 : i64, scratch_operands = 0 : i64, tpu.core_type = #tpu.core_type<tc>, window_params = [{transform_indices = @transform_0, window_bounds = array<i64: 8, 1>}, {transform_indices = @transform_1, window_bounds = array<i64: 8, 32>}, {transform_indices = @transform_2, window_bounds = array<i64: 1, 8, 128>}]} {
    %c0 = arith.constant 0 : index
    %c0_0 = arith.constant 0 : index
    %0 = vector.load %arg2[%c0, %c0_0] : memref<8x32xf32, #tpu.memory_space<vmem>>, vector<8x32xf32>
    %c0_1 = arith.constant 0 : index
    %c0_2 = arith.constant 0 : index
    %1 = vector.load %arg1[%c0_1, %c0_2] : memref<8x1xi32, #tpu.memory_space<vmem>>, vector<8x1xi32>
    %cst = arith.constant dense<0xFF800000> : vector<8xf32>
    %2 = vector.multi_reduction <maximumf>, %0, %cst [1] : vector<8x32xf32> to vector<8xf32>
    %3 = vector.shape_cast %2 : vector<8xf32> to vector<8x1xf32>
    %4 = vector.broadcast %3 : vector<8x1xf32> to vector<8x32xf32>
    %5 = arith.subf %0, %4 : vector<8x32xf32>
    %6 = math.exp %5 : vector<8x32xf32>
    %cst_3 = arith.constant dense<0.000000e+00> : vector<8xf32>
    %7 = vector.multi_reduction <add>, %6, %cst_3 [1] : vector<8x32xf32> to vector<8xf32>
    %8 = vector.shape_cast %7 : vector<8xf32> to vector<8x1xf32>
    %9 = math.log %8 : vector<8x1xf32>
    %10 = tpu.iota {dimensions = array<i32: 1>} : vector<1x32xi32>
    %11 = vector.broadcast %10 : vector<1x32xi32> to vector<8x32xi32>
    %12 = vector.broadcast %1 : vector<8x1xi32> to vector<8x32xi32>
    %13 = arith.cmpi eq, %11, %12 : vector<8x32xi32>
    %cst_4 = arith.constant 0.899999976 : f32
    %cst_5 = arith.constant 0.0032258064 : f32
    %14 = vector.broadcast %cst_4 : f32 to vector<8x32xf32>
    %15 = vector.broadcast %cst_5 : f32 to vector<8x32xf32>
    %16 = arith.select %13, %14, %15 : vector<8x32xi1>, vector<8x32xf32>
    %17 = arith.mulf %16, %0 : vector<8x32xf32>
    %cst_6 = arith.constant dense<0.000000e+00> : vector<8xf32>
    %18 = vector.multi_reduction <add>, %17, %cst_6 [1] : vector<8x32xf32> to vector<8xf32>
    %19 = vector.shape_cast %18 : vector<8xf32> to vector<8x1xf32>
    %20 = arith.addf %3, %9 : vector<8x1xf32>
    %21 = arith.subf %20, %19 : vector<8x1xf32>
    %c8_i32 = arith.constant 8 : i32
    %22 = arith.muli %arg0, %c8_i32 : i32
    %23 = tpu.iota {dimensions = array<i32: 0>} : vector<8x1xi32>
    %24 = vector.broadcast %22 : i32 to vector<8x1xi32>
    %25 = arith.addi %24, %23 : vector<8x1xi32>
    %c8_i32_7 = arith.constant 8 : i32
    %26 = vector.broadcast %c8_i32_7 : i32 to vector<8x1xi32>
    %27 = arith.cmpi slt, %25, %26 : vector<8x1xi32>
    %cst_8 = arith.constant 0.000000e+00 : f32
    %28 = vector.broadcast %cst_8 : f32 to vector<8x1xf32>
    %29 = arith.select %27, %21, %28 : vector<8x1xi1>, vector<8x1xf32>
    %30 = vector.shape_cast %29 : vector<8x1xf32> to vector<1x8x1xf32>
    %cst_9 = arith.constant dense<0.000000e+00> : vector<1xf32>
    %31 = vector.multi_reduction <add>, %30, %cst_9 [1, 2] : vector<1x8x1xf32> to vector<1xf32>
    %32 = vector.shape_cast %31 : vector<1xf32> to vector<1x1x1xf32>
    %33 = vector.extract %32[0, 0, 0] : f32 from vector<1x1x1xf32>
    %34 = tpu.iota {dimensions = array<i32: 1>} : vector<1x8x128xi32>
    %35 = tpu.iota {dimensions = array<i32: 2>} : vector<1x8x128xi32>
    %c0_i32 = arith.constant 0 : i32
    %36 = vector.broadcast %c0_i32 : i32 to vector<1x8x128xi32>
    %37 = arith.cmpi eq, %34, %36 : vector<1x8x128xi32>
    %c0_i32_10 = arith.constant 0 : i32
    %38 = vector.broadcast %c0_i32_10 : i32 to vector<1x8x128xi32>
    %39 = arith.cmpi eq, %35, %38 : vector<1x8x128xi32>
    %40 = arith.andi %37, %39 : vector<1x8x128xi1>
    %cst_11 = arith.constant 0.000000e+00 : f32
    %41 = vector.broadcast %33 : f32 to vector<1x8x128xf32>
    %42 = vector.broadcast %cst_11 : f32 to vector<1x8x128xf32>
    %43 = arith.select %40, %41, %42 : vector<1x8x128xi1>, vector<1x8x128xf32>
    %c0_12 = arith.constant 0 : index
    %c0_13 = arith.constant 0 : index
    %c0_14 = arith.constant 0 : index
    %44 = vector.load %arg3[%c0_12, %c0_13, %c0_14] : memref<1x8x128xf32, #tpu.memory_space<vmem>>, vector<1x8x128xf32>
    tpu.vector_store %arg3[%c0_12, %c0_13, %c0_14], %43 {strides = array<i32>} : memref<1x8x128xf32, #tpu.memory_space<vmem>>, vector<1x8x128xf32>,
    return
  }
  func.func @transform_0(%arg0: i32) -> (i32, i32) {
    %c0_i32 = arith.constant 0 : i32
    %c0_i32_0 = arith.constant 0 : i32
    return %arg0, %c0_i32 : i32, i32
  }
  func.func @transform_1(%arg0: i32) -> (i32, i32) {
    %c0_i32 = arith.constant 0 : i32
    %c0_i32_0 = arith.constant 0 : i32
    return %arg0, %c0_i32 : i32, i32
  }
  func.func @transform_2(%arg0: i32) -> (i32, i32, i32) {
    %c0_i32 = arith.constant 0 : i32
    %c0_i32_0 = arith.constant 0 : i32
    %c0_i32_1 = arith.constant 0 : i32
    return %arg0, %c0_i32, %c0_i32_0 : i32, i32, i32
  }
}

</mosaic_0001>

<llo_original>
// kernel: tpu_custom_call.1
$region0: #{tpu_custom_call.1}
  #allocation0 [shape = 'u32[]', space=smem, size = 0x4, offset = 0x4, fixed_abs, tag = 'smem constant byte address 0x4 - core index']
  #allocation1 [shape = 'u32[144,128]{1,0:T(1,128)}', space=vmem, size = 0x12000, scoped, tag = 'internal scratch']
  %s0 = inlined_call_operand.vmem [shape: s32[8,1], index: 0, kind: input, shape index: {}]
  %s1 = inlined_call_operand.vmem [shape: f32[8,32], index: 1, kind: input, shape index: {}]
  %s2 = inlined_call_operand.hbm [shape: f32[1,8,128], index: 2, kind: output, shape index: {}]
  %s3 = sld [smem:[#allocation0]]
  $region18: #{tpu_custom_call.1} parent=0
    _
  %s5 = ssub.s32 1, %s3
  %s6 = scalar_select 0, %s5, %s3
  $region1: #{tpu_custom_call.1} parent=0
    #allocation2 [shape = 'u8[4096]{0}', space=vmem, size = 0x1000, scoped, tag = 'output window, operand 0, single buffered']
    #allocation3 [shape = 's32[1]{0}', space=sflag, size = 0x4, scoped, tag = 'scoped memory for tpu_custom_call.1']
    %7 = vsyncpa [#allocation3], 0
    // Predicated region
    $region2: #{tpu_custom_call.1} parent=1 // pred_check
      _
    $region3: #{tpu_custom_call.1} parent=1 // pred_check_branch
      %9 = sbr.rel (0) target = $region5
    $region4: #{tpu_custom_call.1} parent=1 // pred_region
      _
    $region5: #{tpu_custom_call.1} parent=1 // pred_fallthru
      _
    // Predicated region
    $region6: #{tpu_custom_call.1} parent=1 // pred_check
      _
    $region7: #{tpu_custom_call.1} parent=1 // pred_check_branch
      %11 = sbr.rel (0) target = $region9
    $region8: #{tpu_custom_call.1} parent=1 // pred_region
      _
    $region9: #{tpu_custom_call.1} parent=1 // pred_fallthru
      _
    %v12 = vld [vmem:[%s1] sm:$0xff]
    %v13 = vld [vmem:[%s0] sm:$0xff]
    %vm14 = vcmask 261120
    %v15 = vsel %vm14, %v12, -inf
    %16 = vmax.xlane.f32.xlu0 %v15
    %v17 = vpop.xlane.xlu0 %16
    %v18 = vsub.f32 %v12, %v17
    %v19 = vmul.f32 %v18, 1.442695
    %v20 = vpow.pop %v19
    %v21 = vsel %vm14, %v20, 0.0
    %22 = vadd.xlane.f32.xlu0 %v21
    %v23 = vpop.xlane.xlu0 %22
    %v24 = vlog2.pop %v23
    %v25 = vmul.f32 %v24, 0.6931472
    %v26 = vlaneseq
    %v27 = vand.u32 %v26, 127
    %28 = vset.pattern.permute.xlu0 0
    %29 = vperm.xlu0 %28, %v13
    %v30 = vpop.permute.xlu0 %29
    %vm31 = vcmp.eq.s32.totalorder %v27, %v30
    %v32 = vsel %vm31, 0.9, 0.0032258064
    %v33 = vmul.f32 %v32, %v12
    %v34 = vsel %vm14, %v33, 0.0
    %35 = vadd.xlane.f32.xlu0 %v34
    %v36 = vpop.xlane.xlu0 %35
    %v37 = vadd.f32 %v17, %v25
    %v38 = vsub.f32 %v37, %v36
    %s39 = smul.u32 0, 8
    %v40 = vlaneseq
    %v41 = vshrl.u32 %v40, 7
    %v42 = vstv %s39
    %v43 = vadd.s32 %v42, %v41
    %vm44 = vcmp.lt.s32.totalorder %v43, 8
    %v45 = vsel %vm44, %v38, 0.0
    %vm46 = vcmask 7168
    %v47 = vsel %vm46, %v45, 0.0
    %48 = vadd.xlane.f32.xlu0 %v47
    %v49 = vpop.xlane.xlu0 %48
    %v50 = vrot.slane %v49, 4
    %v51 = vadd.f32 %v49, %v50
    %v52 = vrot.slane %v51, 2
    %v53 = vadd.f32 %v51, %v52
    %v54 = vrot.slane %v53, 1
    %v55 = vadd.f32 %v53, %v54
    %s56 = vtos %v55
    %vm57 = vcmp.eq.s32.totalorder %v41, 0
    %vm58 = vcmp.eq.s32.totalorder %v27, 0
    %vm59 = vmand %vm57, %vm58
    %v60 = vstv %s56
    %v61 = vsel %vm59, %v60, 0.0
    %62 = vst [vmem:[#allocation2] sm:$0xff] %v61
    // Predicated region
    $region10: #{tpu_custom_call.1} parent=1 // pred_check
      _
    $region11: #{tpu_custom_call.1} parent=1 // pred_check_branch
      %64 = sbr.rel (0) target = $region13
    $region12: #{tpu_custom_call.1} parent=1 // pred_region
      %s66 = ssub.s32 128, 128
      %67 = vsyncadd [#allocation3], %s66
      %s69 = sshll.u32 [#allocation2], 4
      %s70 = int_to_ptr.vmem [resolvable:$true] %s69
      %72 = dma.vmem_to_hbm [thread:$0]  %s70, 128, %s2, [#allocation3]
    $region13: #{tpu_custom_call.1} parent=1 // pred_fallthru
      _
    // Predicated region
    $region14: #{tpu_custom_call.1} parent=1 // pred_check
      _
    $region15: #{tpu_custom_call.1} parent=1 // pred_check_branch
      %74 = sbr.rel (0) target = $region17
    $region16: #{tpu_custom_call.1} parent=1 // pred_region
      %75 = dma.done [#allocation3], 128
    $region17: #{tpu_custom_call.1} parent=1 // pred_fallthru
      _
    %76 = vsyncpa [#allocation3], 1

</llo_original>
